<compile_context>
chip_gen: v6e
topology: v6e:2x2x1
jax: 0.10.0
libtpu: 0.0.40
codegen_flags: <defaults>
</compile_context>

<pallas_src>
import jax
import jax.numpy as jnp
import numpy as np
from jax.experimental import pallas as pl
from jax.experimental.pallas import tpu as pltpu

_LANE = 128      # lane-dense feature width (unmasked stores, full MXU tiles)
_SUBLANE = 8     # node-dim granularity


def _round_up(x, m):
    return (x + m - 1) // m * m


# ----------------------------------------------------------------------------
# Kernel: one SAGEConv layer per grid step; activations carried in VMEM.
# ----------------------------------------------------------------------------
def _gnn_layer_kernel(a_ref, x_ref, w_ref, b_ref, o_ref, h_ref):
    layer = pl.program_id(0)
    last = pl.num_programs(0) - 1

    @pl.when(layer == 0)
    def _():
        h_ref[...] = x_ref[...]          # initialize carried activations

    h = h_ref[...]                       # (Np, Fp) f32
    # mean aggregation of in-neighbors: (Np, Np) @ (Np, Fp)
    agg = jnp.dot(a_ref[...], h, preferred_element_type=jnp.float32)

    w = w_ref[0]                         # (2, Fp, Fp) bf16, this layer only
    w_l = w[0].astype(jnp.float32)
    w_r = w[1].astype(jnp.float32)

    out = (jnp.dot(agg, w_l, preferred_element_type=jnp.float32)
           + jnp.dot(h, w_r, preferred_element_type=jnp.float32)
           + b_ref[0])                   # (1, Fp) bias broadcast

    # Carry ReLU(out) for the next layer (write at the last step is unused);
    # conv5's output is emitted below without ReLU.
    h_ref[...] = jnp.maximum(out, 0.0)

    @pl.when(layer == last)
    def _():
        o_ref[...] = out.astype(o_ref.dtype)


# ----------------------------------------------------------------------------
# Host-side glue: adjacency, parameter init, one-time packing, forward wrapper.
# ----------------------------------------------------------------------------
def build_mean_adjacency(edge_index, num_nodes):
    """Dense row-normalized adjacency reproducing PyG scatter-mean aggregation."""
    src = edge_index[0]
    dst = edge_index[1]
    a = jnp.zeros((num_nodes, num_nodes), jnp.float32).at[dst, src].add(1.0)
    deg = jnp.sum(a, axis=1, keepdims=True)
    return a / jnp.maximum(deg, 1.0)


def init_sage_params(key, in_channels, out_channels):
    """Glorot-style init for one SAGEConv (lin_l has bias, lin_r has none)."""
    k_l, k_r = jax.random.split(key)
    scale = jnp.sqrt(6.0 / (in_channels + out_channels))
    w_l = jax.random.uniform(k_l, (in_channels, out_channels), jnp.float32, -scale, scale)
    w_r = jax.random.uniform(k_r, (in_channels, out_channels), jnp.float32, -scale, scale)
    b = jnp.zeros((1, out_channels), jnp.float32)
    return w_l, w_r, b


def gnn_encoder_init(key, in_channels, hidden_channels, out_channels):
    keys = jax.random.split(key, 5)
    dims = [
        (in_channels, hidden_channels),       # conv1
        (hidden_channels, out_channels),      # conv2
        (out_channels, out_channels),         # conv3
        (out_channels, out_channels),         # conv4
        (out_channels, out_channels),         # conv5
    ]
    return [init_sage_params(k, fi, fo) for k, (fi, fo) in zip(keys, dims)]


def pack_gnn_params(params):
    """One-time packing: zero-pad each layer to (Fp, Fp), stack, cast weights to bf16.

    Zero padding is exact: padded input lanes stay zero through every layer
    (padded weight rows/cols and bias lanes are zero), so the final slice to
    the real feature width is lossless.
    """
    f_pad = _round_up(
        max([w_l.shape[0] for (w_l, _, _) in params]
            + [w_l.shape[1] for (w_l, _, _) in params]),
        _LANE)
    w_stack, b_stack = [], []
    for w_l, w_r, b in params:
        fi, fo = w_l.shape
        w = jnp.zeros((2, f_pad, f_pad), jnp.float32)
        w = w.at[0, :fi, :fo].set(w_l)
        w = w.at[1, :fi, :fo].set(w_r)
        w_stack.append(w)
        b_stack.append(jnp.zeros((1, f_pad), jnp.float32).at[:, :fo].set(b))
    return {
        "w": jnp.stack(w_stack).astype(jnp.bfloat16),   # (L, 2, Fp, Fp) bf16
        "b": jnp.stack(b_stack),                        # (L, 1, Fp)     f32
        "f_pad": f_pad,
        "out_channels": params[-1][0].shape[1],
        "num_layers": len(params),
    }


def gnn_encoder_forward(packed, x, edge_index):
    """Matches GNNEncoder.forward; all 5 SAGEConv layers in one pallas_call."""
    n, f_in = x.shape
    f_pad = packed["f_pad"]
    num_layers = packed["num_layers"]
    n_pad = _round_up(n, _SUBLANE)

    a = build_mean_adjacency(edge_index, n)
    a_pad = jnp.zeros((n_pad, n_pad), jnp.float32).at[:n, :n].set(a)
    x_pad = jnp.zeros((n_pad, f_pad), jnp.float32).at[:n, :f_in].set(x)

    out_pad = pl.pallas_call(
        _gnn_layer_kernel,
        out_shape=jax.ShapeDtypeStruct((n_pad, f_pad), jnp.float32),
        grid=(num_layers,),
        in_specs=[
            # A and X keep a constant block index -> fetched once for the grid.
            pl.BlockSpec((n_pad, n_pad), lambda l: (0, 0)),
            pl.BlockSpec((n_pad, f_pad), lambda l: (0, 0)),
            # Per-layer weights/bias: pipelined (layer l+1 DMA behind layer l).
            pl.BlockSpec((1, 2, f_pad, f_pad), lambda l: (l, 0, 0, 0)),
            pl.BlockSpec((1, 1, f_pad), lambda l: (l, 0, 0)),
        ],
        # Constant block index -> output written back once, at grid end.
        out_specs=pl.BlockSpec((n_pad, f_pad), lambda l: (0, 0)),
        scratch_shapes=[pltpu.VMEM((n_pad, f_pad), jnp.float32)],  # carried h
        compiler_params=pltpu.CompilerParams(dimension_semantics=("arbitrary",)),
    )(a_pad, x_pad, packed["w"], packed["b"])

    return out_pad[:n, :packed["out_channels"]]


def gnn_reference(params, x, edge_index):
    """Pure-JAX reference (unfused, unpadded) for correctness checking."""
    a = build_mean_adjacency(edge_index, x.shape[0])
    h = x
    with jax.default_matmul_precision("highest"):
        for i, (w_l, w_r, b) in enumerate(params):
            agg = a @ h
            out = agg @ w_l + h @ w_r + b
            if i < len(params) - 1:
                out = jnp.maximum(out, 0.0)
            h = out
    return h


# ----------------------------------------------------------------------------
# Main
# ----------------------------------------------------------------------------
if __name__ == "__main__":
    key = jax.random.PRNGKey(0)
    k_x, k_e, k_p = jax.random.split(key, 3)

    num_nodes = 32
    in_channels = 16
    hidden_channels = 32
    out_channels = 16
    num_edges = 64

    # node features [N, F_in]
    x = jax.random.normal(k_x, (num_nodes, in_channels), jnp.float32)
    # edge_index [2, E]: row 0 = source nodes, row 1 = target nodes
    edge_index = jax.random.randint(k_e, (2, num_edges), 0, num_nodes, jnp.int32)

    params = gnn_encoder_init(k_p, in_channels, hidden_channels, out_channels)
    packed = pack_gnn_params(params)        # one-time packing (hoisted from forward)

    out = gnn_encoder_forward(packed, x, edge_index)
    jax.block_until_ready(out)

    # Reference uses the same effective (bf16-rounded) weights the kernel
    # stores, so the check isolates the kernel math rather than the parameter
    # storage precision.
    eff_params = [
        (w_l.astype(jnp.bfloat16).astype(jnp.float32),
         w_r.astype(jnp.bfloat16).astype(jnp.float32),
         b)
        for (w_l, w_r, b) in params
    ]
    ref = gnn_reference(eff_params, x, edge_index)
    jax.block_until_ready(ref)

    assert out.shape == (num_nodes, out_channels)
    assert out.dtype == jnp.float32
    np.testing.assert_allclose(np.asarray(out), np.asarray(ref), rtol=1e-2, atol=1e-2)
    print("KERNEL_OK")
</pallas_src>

<mosaic_0001>
module attributes {stable_mosaic.version = 11 : i64} {
  func.func @_gnn_layer_kernel(%arg0: i32, %arg1: memref<32x32xf32, #tpu.memory_space<vmem>>, %arg2: memref<32x128xf32, #tpu.memory_space<vmem>>, %arg3: memref<1x2x128x128xbf16, #tpu.memory_space<vmem>>, %arg4: memref<1x1x128xf32, #tpu.memory_space<vmem>>, %arg5: memref<32x128xf32, #tpu.memory_space<vmem>>, %arg6: memref<32x128xf32, #tpu.memory_space<vmem>>) attributes {dimension_semantics = [#tpu.dimension_semantics<arbitrary>], iteration_bounds = array<i64: 5>, scalar_prefetch = 0 : i64, scratch_operands = 1 : i64, tpu.core_type = #tpu.core_type<tc>, window_params = [{pipeline_mode = #tpu.pipeline_mode<synchronous>, transform_indices = @transform_0, window_bounds = array<i64: 32, 32>}, {pipeline_mode = #tpu.pipeline_mode<synchronous>, transform_indices = @transform_1, window_bounds = array<i64: 32, 128>}, {transform_indices = @transform_2, window_bounds = array<i64: 1, 2, 128, 128>}, {transform_indices = @transform_3, window_bounds = array<i64: 1, 1, 128>}, {pipeline_mode = #tpu.pipeline_mode<synchronous>, transform_indices = @transform_4, window_bounds = array<i64: 32, 128>}]} {
    %c0_i32 = arith.constant 0 : i32
    %0 = arith.cmpi eq, %arg0, %c0_i32 : i32
    %1 = arith.extui %0 : i1 to i32
    %c0_i32_0 = arith.constant 0 : i32
    %2 = arith.cmpi ne, %1, %c0_i32_0 : i32
    scf.if %2 {
      %c0_17 = arith.constant 0 : index
      %c0_18 = arith.constant 0 : index
      %27 = vector.load %arg2[%c0_17, %c0_18] : memref<32x128xf32, #tpu.memory_space<vmem>>, vector<32x128xf32>
      %c0_19 = arith.constant 0 : index
      %c0_20 = arith.constant 0 : index
      %28 = vector.load %arg6[%c0_19, %c0_20] : memref<32x128xf32, #tpu.memory_space<vmem>>, vector<32x128xf32>
      tpu.vector_store %arg6[%c0_19, %c0_20], %27 {strides = array<i32>} : memref<32x128xf32, #tpu.memory_space<vmem>>, vector<32x128xf32>,
    } else {
    }
    %c0 = arith.constant 0 : index
    %c0_1 = arith.constant 0 : index
    %3 = vector.load %arg6[%c0, %c0_1] : memref<32x128xf32, #tpu.memory_space<vmem>>, vector<32x128xf32>
    %c0_2 = arith.constant 0 : index
    %c0_3 = arith.constant 0 : index
    %4 = vector.load %arg1[%c0_2, %c0_3] : memref<32x32xf32, #tpu.memory_space<vmem>>, vector<32x32xf32>
    %cst = arith.constant dense<0.000000e+00> : vector<32x128xf32>
    %5 = tpu.matmul %4, %3, %cst {dimension_numbers = #tpu.dot_dimension_numbers<[1], [0], [0], [1], [0, 0, 1, 1], [], []>} : vector<32x32xf32>, vector<32x128xf32>, vector<32x128xf32> -> vector<32x128xf32>
    %c0_4 = arith.constant 0 : index
    %c0_5 = arith.constant 0 : index
    %c0_6 = arith.constant 0 : index
    %c0_7 = arith.constant 0 : index
    %6 = vector.load %arg3[%c0_4, %c0_5, %c0_6, %c0_7] : memref<1x2x128x128xbf16, #tpu.memory_space<vmem>>, vector<1x2x128x128xbf16>
    %7 = vector.shape_cast %6 : vector<1x2x128x128xbf16> to vector<2x128x128xbf16>
    %8 = vector.extract_strided_slice %7 {offsets = [0, 0, 0], sizes = [1, 128, 128], strides = [1, 1, 1]} : vector<2x128x128xbf16> to vector<1x128x128xbf16>
    %9 = vector.shape_cast %8 : vector<1x128x128xbf16> to vector<128x128xbf16>
    %10 = arith.extf %9 : vector<128x128xbf16> to vector<128x128xf32>
    %11 = vector.extract_strided_slice %7 {offsets = [1, 0, 0], sizes = [1, 128, 128], strides = [1, 1, 1]} : vector<2x128x128xbf16> to vector<1x128x128xbf16>
    %12 = vector.shape_cast %11 : vector<1x128x128xbf16> to vector<128x128xbf16>
    %13 = arith.extf %12 : vector<128x128xbf16> to vector<128x128xf32>
    %cst_8 = arith.constant dense<0.000000e+00> : vector<32x128xf32>
    %14 = tpu.matmul %5, %10, %cst_8 {dimension_numbers = #tpu.dot_dimension_numbers<[1], [0], [0], [1], [0, 0, 1, 1], [], []>} : vector<32x128xf32>, vector<128x128xf32>, vector<32x128xf32> -> vector<32x128xf32>
    %cst_9 = arith.constant dense<0.000000e+00> : vector<32x128xf32>
    %15 = tpu.matmul %3, %13, %cst_9 {dimension_numbers = #tpu.dot_dimension_numbers<[1], [0], [0], [1], [0, 0, 1, 1], [], []>} : vector<32x128xf32>, vector<128x128xf32>, vector<32x128xf32> -> vector<32x128xf32>
    %16 = arith.addf %14, %15 : vector<32x128xf32>
    %c0_10 = arith.constant 0 : index
    %c0_11 = arith.constant 0 : index
    %c0_12 = arith.constant 0 : index
    %17 = vector.load %arg4[%c0_10, %c0_11, %c0_12] : memref<1x1x128xf32, #tpu.memory_space<vmem>>, vector<1x1x128xf32>
    %18 = vector.shape_cast %17 : vector<1x1x128xf32> to vector<1x128xf32>
    %19 = vector.broadcast %18 : vector<1x128xf32> to vector<32x128xf32>
    %20 = arith.addf %16, %19 : vector<32x128xf32>
    %cst_13 = arith.constant 0.000000e+00 : f32
    %21 = vector.broadcast %cst_13 : f32 to vector<32x128xf32>
    %22 = arith.maximumf %20, %21 : vector<32x128xf32>
    %c0_14 = arith.constant 0 : index
    %c0_15 = arith.constant 0 : index
    %23 = vector.load %arg6[%c0_14, %c0_15] : memref<32x128xf32, #tpu.memory_space<vmem>>, vector<32x128xf32>
    tpu.vector_store %arg6[%c0_14, %c0_15], %22 {strides = array<i32>} : memref<32x128xf32, #tpu.memory_space<vmem>>, vector<32x128xf32>,
    %c4_i32 = arith.constant 4 : i32
    %24 = arith.cmpi eq, %arg0, %c4_i32 : i32
    %25 = arith.extui %24 : i1 to i32
    %c0_i32_16 = arith.constant 0 : i32
    %26 = arith.cmpi ne, %25, %c0_i32_16 : i32
    scf.if %26 {
      %c0_17 = arith.constant 0 : index
      %c0_18 = arith.constant 0 : index
      %27 = vector.load %arg5[%c0_17, %c0_18] : memref<32x128xf32, #tpu.memory_space<vmem>>, vector<32x128xf32>
      tpu.vector_store %arg5[%c0_17, %c0_18], %20 {strides = array<i32>} : memref<32x128xf32, #tpu.memory_space<vmem>>, vector<32x128xf32>,
    } else {
    }
    return
  }
  func.func @transform_0(%arg0: i32) -> (i32, i32) {
    %c0_i32 = arith.constant 0 : i32
    %c0_i32_0 = arith.constant 0 : i32
    %c0_i32_1 = arith.constant 0 : i32
    return %c0_i32, %c0_i32_0 : i32, i32
  }
  func.func @transform_1(%arg0: i32) -> (i32, i32) {
    %c0_i32 = arith.constant 0 : i32
    %c0_i32_0 = arith.constant 0 : i32
    %c0_i32_1 = arith.constant 0 : i32
    return %c0_i32, %c0_i32_0 : i32, i32
  }
  func.func @transform_2(%arg0: i32) -> (i32, i32, i32, i32) {
    %c0_i32 = arith.constant 0 : i32
    %c0_i32_0 = arith.constant 0 : i32
    %c0_i32_1 = arith.constant 0 : i32
    %c0_i32_2 = arith.constant 0 : i32
    return %arg0, %c0_i32, %c0_i32_0, %c0_i32_1 : i32, i32, i32, i32
  }
  func.func @transform_3(%arg0: i32) -> (i32, i32, i32) {
    %c0_i32 = arith.constant 0 : i32
    %c0_i32_0 = arith.constant 0 : i32
    %c0_i32_1 = arith.constant 0 : i32
    return %arg0, %c0_i32, %c0_i32_0 : i32, i32, i32
  }
  func.func @transform_4(%arg0: i32) -> (i32, i32) {
    %c0_i32 = arith.constant 0 : i32
    %c0_i32_0 = arith.constant 0 : i32
    %c0_i32_1 = arith.constant 0 : i32
    return %c0_i32, %c0_i32_0 : i32, i32
  }
}

</mosaic_0001>

<llo_original>
// kernel: tpu_custom_call.1
$region0: #{tpu_custom_call.1}
  #allocation0 [shape = 'u32[]', space=smem, size = 0x4, offset = 0x4, fixed_abs, tag = 'smem constant byte address 0x4 - core index']
  #allocation1 [shape = 'u32[144,128]{1,0:T(1,128)}', space=vmem, size = 0x12000, scoped, tag = 'internal scratch']
  #allocation2 [shape = 'f32[32,128]{1,0:T(8,128)}', space=vmem, size = 0x4000, scoped, tag = 'scratch operand']
  %s0 = inlined_call_operand.hbm [shape: f32[32,32], index: 0, kind: input, shape index: {}]
  %s1 = inlined_call_operand.hbm [shape: f32[32,128], index: 1, kind: input, shape index: {}]
  %s2 = inlined_call_operand.hbm [shape: bf16[5,2,128,128], index: 2, kind: input, shape index: {}]
  %s3 = inlined_call_operand.vmem [shape: f32[5,1,128], index: 3, kind: input, shape index: {}]
  %s4 = inlined_call_operand.hbm [shape: f32[32,128], index: 4, kind: output, shape index: {}]
  %s5 = sld [smem:[#allocation0]]
  $region69: #{tpu_custom_call.1} parent=0
    _
  %s7 = ssub.s32 1, %s5
  %s8 = scalar_select 0, %s7, %s5
  $region1: #{tpu_custom_call.1} parent=0
    #allocation3 [shape = 'u8[16384]{0}', space=vmem, size = 0x4000, scoped, tag = 'input window, operand 0, single buffered']
    #allocation4 [shape = 's32[2]{0}', space=sflag, size = 0x8, scoped, tag = 'scoped memory for tpu_custom_call.1']
    #allocation5 [shape = 's32[2]{0}', space=sflag, size = 0x8, scoped, tag = 'scoped memory for tpu_custom_call.1']
    #allocation6 [shape = 'u8[16384]{0}', space=vmem, size = 0x4000, scoped, tag = 'input window, operand 1, single buffered']
    #allocation7 [shape = 's32[1]{0}', space=sflag, size = 0x4, scoped, tag = 'scoped memory for tpu_custom_call.1']
    #allocation8 [shape = 'u8[131072]{0}', space=vmem, size = 0x20000, scoped, tag = 'input window, operand 2']
    #allocation9 [shape = 'u8[16384]{0}', space=vmem, size = 0x4000, scoped, tag = 'output window, operand 0, single buffered']
    %9 = vsyncpa [#allocation4], 0
    %10 = vsyncpa [#allocation7], 0
    %11 = vsyncpa [#allocation5], 0
    loop: start=0, step=1, limit=7
    $region2: #{tpu_custom_call.1} parent=1 // loop_pre_header
      _
    $region3: #{tpu_custom_call.1} parent=1 // loop_header
      %s13 = sphi 0, %s17
      %p14 = scmp.ge.s32.totalorder %s13, 7
      %s21 = sphi 0, %s21
      %s23 = sphi 0, %s21
      %s24 = sphi 0, %s23
      %s38 = sphi 0, %s24
      %s42 = sphi 0, %s42
      %s44 = sphi 0, %s42
      %s45 = sphi 0, %s44
      %s59 = sphi 0, %s45
      %s65 = sphi 0, %s67
      %s68 = sphi 0, %s65
      %s69 = sphi 0, %s68
      %s85 = sphi 0, %s69
      %s91 = sphi 0, %s93
      %s94 = sphi 0, %s91
      %s95 = sphi 0, %s94
      %s111 = sphi 0, %s95
      %s115 = sphi 0, %s115
      %s117 = sphi 0, %s115
      %s118 = sphi 0, %s117
      %s132 = sphi 0, %s118
    $region4: #{tpu_custom_call.1} parent=1 // loop_header_branch
      %16 = sbr.rel (%p14) target = $region8
    $region5: #{tpu_custom_call.1} parent=1 // loop_body
      %s18 = ssub.s32 %s13, 1
      %s19 = ssub.s32 %s13, 2
      %s20 = sadd.s32 %s13, 1
      %s22 = sadd.s32 %s21, 1
      %p25 = scmp.eq.s32.totalorder %s13, 4
      %p26 = scmp.ne.s32.totalorder %s21, %s23
      %p27 = scmp.eq.s32.totalorder %s13, 0
      %p28 = por %p26, %p27
      %p29 = scmp.ne.s32.totalorder %s21, %s23
      %p30 = scmp.eq.s32.totalorder %s18, 4
      %p31 = por %p29, %p30
      %p32 = scmp.ne.s32.totalorder %s23, %s24
      %p33 = scmp.eq.s32.totalorder %s18, 0
      %p34 = por %p32, %p33
      %p35 = scmp.ne.s32.totalorder %s23, %s24
      %p36 = scmp.eq.s32.totalorder %s19, 4
      %p37 = por %p35, %p36
      %p39 = scmp.ne.s32.totalorder %s24, %s38
      %p40 = scmp.eq.s32.totalorder %s19, 0
      %p41 = por %p39, %p40
      %s43 = sadd.s32 %s42, 1
      %p46 = scmp.eq.s32.totalorder %s13, 4
      %p47 = scmp.ne.s32.totalorder %s42, %s44
      %p48 = scmp.eq.s32.totalorder %s13, 0
      %p49 = por %p47, %p48
      %p50 = scmp.ne.s32.totalorder %s42, %s44
      %p51 = scmp.eq.s32.totalorder %s18, 4
      %p52 = por %p50, %p51
      %p53 = scmp.ne.s32.totalorder %s44, %s45
      %p54 = scmp.eq.s32.totalorder %s18, 0
      %p55 = por %p53, %p54
      %p56 = scmp.ne.s32.totalorder %s44, %s45
      %p57 = scmp.eq.s32.totalorder %s19, 4
      %p58 = por %p56, %p57
      %p60 = scmp.ne.s32.totalorder %s45, %s59
      %p61 = scmp.eq.s32.totalorder %s19, 0
      %p62 = por %p60, %p61
      %s63 = ssub.s32 %s13, %s20
      %p64 = scmp.eq.s32.totalorder %s63, 0
      %s66 = sadd.s32 %s65, 1
      %s67 = scalar_select %p64, %s65, %s66
      %p70 = pneg %p64
      %p71 = scmp.eq.s32.totalorder %s13, 4
      %p72 = por %p70, %p71
      %p73 = scmp.ne.s32.totalorder %s65, %s68
      %p74 = scmp.eq.s32.totalorder %s13, 0
      %p75 = por %p73, %p74
      %p76 = scmp.ne.s32.totalorder %s65, %s68
      %p77 = scmp.eq.s32.totalorder %s18, 4
      %p78 = por %p76, %p77
      %p79 = scmp.ne.s32.totalorder %s68, %s69
      %p80 = scmp.eq.s32.totalorder %s18, 0
      %p81 = por %p79, %p80
      %p82 = scmp.ne.s32.totalorder %s68, %s69
      %p83 = scmp.eq.s32.totalorder %s19, 4
      %p84 = por %p82, %p83
      %p86 = scmp.ne.s32.totalorder %s69, %s85
      %p87 = scmp.eq.s32.totalorder %s19, 0
      %p88 = por %p86, %p87
      %s89 = ssub.s32 %s13, %s20
      %p90 = scmp.eq.s32.totalorder %s89, 0
      %s92 = sadd.s32 %s91, 1
      %s93 = scalar_select %p90, %s91, %s92
      %p96 = pneg %p90
      %p97 = scmp.eq.s32.totalorder %s13, 4
      %p98 = por %p96, %p97
      %p99 = scmp.ne.s32.totalorder %s91, %s94
      %p100 = scmp.eq.s32.totalorder %s13, 0
      %p101 = por %p99, %p100
      %p102 = scmp.ne.s32.totalorder %s91, %s94
      %p103 = scmp.eq.s32.totalorder %s18, 4
      %p104 = por %p102, %p103
      %p105 = scmp.ne.s32.totalorder %s94, %s95
      %p106 = scmp.eq.s32.totalorder %s18, 0
      %p107 = por %p105, %p106
      %p108 = scmp.ne.s32.totalorder %s94, %s95
      %p109 = scmp.eq.s32.totalorder %s19, 4
      %p110 = por %p108, %p109
      %p112 = scmp.ne.s32.totalorder %s95, %s111
      %p113 = scmp.eq.s32.totalorder %s19, 0
      %p114 = por %p112, %p113
      %s116 = sadd.s32 %s115, 1
      %p119 = scmp.eq.s32.totalorder %s13, 4
      %p120 = scmp.ne.s32.totalorder %s115, %s117
      %p121 = scmp.eq.s32.totalorder %s13, 0
      %p122 = por %p120, %p121
      %p123 = scmp.ne.s32.totalorder %s115, %s117
      %p124 = scmp.eq.s32.totalorder %s18, 4
      %p125 = por %p123, %p124
      %p126 = scmp.ne.s32.totalorder %s117, %s118
      %p127 = scmp.eq.s32.totalorder %s18, 0
      %p128 = por %p126, %p127
      %p129 = scmp.ne.s32.totalorder %s117, %s118
      %p130 = scmp.eq.s32.totalorder %s19, 4
      %p131 = por %p129, %p130
      %p133 = scmp.ne.s32.totalorder %s118, %s132
      %p134 = scmp.eq.s32.totalorder %s19, 0
      %p135 = por %p133, %p134
      %p136 = scmp.le.s32.totalorder 1, %s13
      %p137 = scmp.lt.s32.totalorder %s13, 6
      %p138 = pnand %p136, %p137
      %p139 = pneg %p138
      // Predicated region
      $region9: #{tpu_custom_call.1} parent=5 // pred_check
        _
      $region10: #{tpu_custom_call.1} parent=5 // pred_check_branch
        %141 = sbr.rel (%p138) target = $region12
      $region11: #{tpu_custom_call.1} parent=5 // pred_region
        %s142 = ssub.s32 %s13, 1
        // Predicated region
        $region13: #{tpu_custom_call.1} parent=11 // pred_check
          %p143 = pneg %p34
        $region14: #{tpu_custom_call.1} parent=11 // pred_check_branch
          %145 = sbr.rel (%p143) target = $region16
        $region15: #{tpu_custom_call.1} parent=11 // pred_region
          %s147 = ssub.s32 512, 512
          %148 = vsyncadd [#allocation4], %s147
          %s149 = sshll.u32 [#allocation3], 4
          %s150 = int_to_ptr.vmem [resolvable:$true] %s149
          %155 = dma.hbm_to_vmem [thread:$0]  %s0, 512, %s150, [#allocation4], 128, 128, 8
        $region16: #{tpu_custom_call.1} parent=11 // pred_fallthru
          _
        // Predicated region
        $region17: #{tpu_custom_call.1} parent=11 // pred_check
          %p156 = pneg %p55
        $region18: #{tpu_custom_call.1} parent=11 // pred_check_branch
          %158 = sbr.rel (%p156) target = $region20
        $region19: #{tpu_custom_call.1} parent=11 // pred_region
          %s160 = ssub.s32 512, 512
          %161 = vsyncadd [#allocation7], %s160
          %s162 = sshll.u32 [#allocation6], 4
          %s163 = int_to_ptr.vmem [resolvable:$true] %s162
          %168 = dma.hbm_to_vmem [thread:$0]  %s1, 512, %s163, [#allocation7], 128, 128, 8
        $region20: #{tpu_custom_call.1} parent=11 // pred_fallthru
          _
      $region12: #{tpu_custom_call.1} parent=5 // pred_fallthru
        _
      %p169 = scmp.lt.s32.totalorder %s13, 5
      // Predicated region
      $region21: #{tpu_custom_call.1} parent=5 // pred_check
        %p170 = pneg %p169
      $region22: #{tpu_custom_call.1} parent=5 // pred_check_branch
        %172 = sbr.rel (%p170) target = $region24
      $region23: #{tpu_custom_call.1} parent=5 // pred_region
        // Predicated region
        $region25: #{tpu_custom_call.1} parent=23 // pred_check
          %p173 = pneg %p75
        $region26: #{tpu_custom_call.1} parent=23 // pred_check_branch
          %175 = sbr.rel (%p173) target = $region28
        $region27: #{tpu_custom_call.1} parent=23 // pred_region
          %s176 = sand.u32 %s13, 1
          %s177 = scalar_lea.sflag [#allocation4], %s176
          %s178 = sand.u32 %s65, 1
          %s179 = smul.addr %s178, 128
          %s180 = scalar_lea.vmem [#allocation8], %s179
          %s182 = ssub.s32 2048, 2048
          %183 = vsyncadd %s177, %s182
          %s184 = smul.addr %s13, 32
          %s185 = smul.addr %s184, 64
          %s186 = scalar_lea.hbm %s2, %s185
          %s187 = sshll.u32 %s180, 4
          %s188 = int_to_ptr.vmem [resolvable:$true] %s187
          %193 = dma.hbm_to_vmem [thread:$0]  %s186, 2048, %s188, %s177, 64, 64, 4
        $region28: #{tpu_custom_call.1} parent=23 // pred_fallthru
          _
        // Predicated region
        $region29: #{tpu_custom_call.1} parent=23 // pred_check
          %p194 = pneg %p101
        $region30: #{tpu_custom_call.1} parent=23 // pred_check_branch
          %196 = sbr.rel (%p194) target = $region32
        $region31: #{tpu_custom_call.1} parent=23 // pred_region
          %p197 = scmp.lt.s32.totalorder %s13, 4
          %s198 = scalar_select %p197, %s13, 4
          %s199 = scalar_lea.vmem %s3, %s198
        $region32: #{tpu_custom_call.1} parent=23 // pred_fallthru
          _
      $region24: #{tpu_custom_call.1} parent=5 // pred_fallthru
        _
      %p200 = scmp.le.s32.totalorder 1, %s13
      %p201 = scmp.lt.s32.totalorder %s13, 6
      %p202 = pnand %p200, %p201
      %p203 = pneg %p202
      // Predicated region
      $region33: #{tpu_custom_call.1} parent=5 // pred_check
        _
      $region34: #{tpu_custom_call.1} parent=5 // pred_check_branch
        %205 = sbr.rel (%p202) target = $region36
      $region35: #{tpu_custom_call.1} parent=5 // pred_region
        %s206 = ssub.s32 %s13, 1
        // Predicated region
        $region37: #{tpu_custom_call.1} parent=35 // pred_check
          %p207 = pneg %p34
        $region38: #{tpu_custom_call.1} parent=35 // pred_check_branch
          %209 = sbr.rel (%p207) target = $region40
        $region39: #{tpu_custom_call.1} parent=35 // pred_region
          %210 = dma.done [#allocation4], 512
        $region40: #{tpu_custom_call.1} parent=35 // pred_fallthru
          _
        // Predicated region
        $region41: #{tpu_custom_call.1} parent=35 // pred_check
          %p211 = pneg %p55
        $region42: #{tpu_custom_call.1} parent=35 // pred_check_branch
          %213 = sbr.rel (%p211) target = $region44
        $region43: #{tpu_custom_call.1} parent=35 // pred_region
          %214 = dma.done [#allocation7], 512
        $region44: #{tpu_custom_call.1} parent=35 // pred_fallthru
          _
        %s215 = sand.u32 %s18, 1
        %s216 = scalar_lea.sflag [#allocation4], %s215
        %s217 = sand.u32 %s68, 1
        %s218 = smul.addr %s217, 128
        %s219 = scalar_lea.vmem [#allocation8], %s218
        // Predicated region
        $region45: #{tpu_custom_call.1} parent=35 // pred_check
          %p220 = pneg %p81
        $region46: #{tpu_custom_call.1} parent=35 // pred_check_branch
          %222 = sbr.rel (%p220) target = $region48
        $region47: #{tpu_custom_call.1} parent=35 // pred_region
          %223 = dma.done %s216, 2048
        $region48: #{tpu_custom_call.1} parent=35 // pred_fallthru
          _
        %p224 = pneg %p34
        %p225 = pneg %p31
        %p226 = pneg %p55
        %p227 = pneg %p52
        %s228 = sand.u32 %s18, 1
        %s229 = scalar_lea.sflag [#allocation4], %s228
        %s230 = sand.u32 %s68, 1
        %s231 = smul.addr %s230, 128
        %s232 = scalar_lea.vmem [#allocation8], %s231
        %p233 = pneg %p81
        %p234 = pneg %p78
        %p235 = scmp.lt.s32.totalorder %s18, 4
        %s236 = scalar_select %p235, %s18, 4
        %s237 = scalar_lea.vmem %s3, %s236
        %p238 = pneg %p107
        %p239 = pneg %p104
        %p240 = pneg %p128
        %p241 = pneg %p125
        %p242 = scmp.lt.s32.totalorder %s18, 4
        %s243 = scalar_select %p242, %s18, 4
        %s244 = scalar_lea.vmem %s3, %s243
        %p245 = scmp.eq.s32.totalorder %s18, 0
        // Predicated region
        $region49: #{tpu_custom_call.1} parent=35 // pred_check
          %p246 = pneg %p245
        $region50: #{tpu_custom_call.1} parent=35 // pred_check_branch
          %248 = sbr.rel (%p246) target = $region52
        $region51: #{tpu_custom_call.1} parent=35 // pred_region
          %v249 = vld [vmem:[#allocation6] sm:$0xff]
          %v250 = vld [vmem:[#allocation6 + $0x8] sm:$0xff]
          %v251 = vld [vmem:[#allocation6 + $0x10] sm:$0xff]
          %v252 = vld [vmem:[#allocation6 + $0x18] sm:$0xff]
          %253 = vst [vmem:[#allocation2] sm:$0xff] %v249
          %254 = vst [vmem:[#allocation2 + $0x8] sm:$0xff] %v250
          %255 = vst [vmem:[#allocation2 + $0x10] sm:$0xff] %v251
          %256 = vst [vmem:[#allocation2 + $0x18] sm:$0xff] %v252
        $region52: #{tpu_custom_call.1} parent=35 // pred_fallthru
          _
        %v257 = vld [vmem:[#allocation2] sm:$0xff]
        %v258 = vld [vmem:[#allocation2 + $0x8] sm:$0xff]
        %v259 = vld [vmem:[#allocation2 + $0x10] sm:$0xff]
        %v260 = vld [vmem:[#allocation2 + $0x18] sm:$0xff]
        %v261 = vld [vmem:[#allocation3] sm:$0xff]
        %v262 = vld [vmem:[#allocation3 + $0x8] sm:$0xff]
        %v263 = vld [vmem:[#allocation3 + $0x10] sm:$0xff]
        %v264 = vld [vmem:[#allocation3 + $0x18] sm:$0xff]
        %vm265 = vcmask 261120
        %v267 = vsel %vm265, %v261, 0
        %v270 = vsel %vm265, %v262, 0
        %v273 = vsel %vm265, %v263, 0
        %v276 = vsel %vm265, %v264, 0
        %278 = vmatprep.subr.mxu0 0.0
        %279 = vmatpush1.msra.mxu0 0.0
        %280 = vmatprep.subr.mxu0 0.0
        %281 = vmatpush1.msra.mxu0 0.0
        %282 = vmatprep.subr.mxu0 0.0
        %283 = vmatpush1.msra.mxu0 0.0
        %284 = vmatprep.subr.mxu0 0.0
        %285 = vmatpush1.msra.mxu0 0.0
        %286 = vmatprep.subr.mxu0 0.0
        %287 = vmatpush1.msra.mxu0 0.0
        %288 = vmatprep.subr.mxu0 0.0
        %289 = vmatpush1.msra.mxu0 0.0
        %290 = vmatprep.subr.mxu0 0.0
        %291 = vmatpush1.msra.mxu0 0.0
        %292 = vmatprep.subr.mxu0 0.0
        %293 = vmatpush1.msra.mxu0 0.0
        %294 = vmatprep.subr.mxu0 0.0
        %295 = vmatpush1.msra.mxu0 0.0
        %296 = vmatprep.subr.mxu0 0.0
        %297 = vmatpush1.msra.mxu0 0.0
        %298 = vmatprep.subr.mxu0 0.0
        %299 = vmatpush1.msra.mxu0 0.0
        %300 = vmatprep.subr.mxu0 0.0
        %301 = vmatpush1.msra.mxu0 0.0
        %302 = vmatprep.subr.mxu0 0.0
        %303 = vmatpush1.msra.mxu0 %v260
        %304 = vmatprep.subr.mxu0 0.0
        %305 = vmatpush1.msra.mxu0 %v259
        %306 = vmatprep.subr.mxu0 0.0
        %307 = vmatpush1.msra.mxu0 %v258
        %308 = vmatprep.subr.mxu0 0.0
        %309 = vmatpush1.msra.mxu0 %v257
        %310 = vmatprep.subr.mxu0 0.0
        %311 = vmatpush2.msra.mxu0 0.0
        %312 = vmatprep.subr.mxu0 0.0
        %313 = vmatpush2.msra.mxu0 0.0
        %314 = vmatprep.subr.mxu0 0.0
        %315 = vmatpush2.msra.mxu0 0.0
        %316 = vmatprep.subr.mxu0 0.0
        %317 = vmatpush2.msra.mxu0 0.0
        %318 = vmatprep.subr.mxu0 0.0
        %319 = vmatpush2.msra.mxu0 0.0
        %320 = vmatprep.subr.mxu0 0.0
        %321 = vmatpush2.msra.mxu0 0.0
        %322 = vmatprep.subr.mxu0 0.0
        %323 = vmatpush2.msra.mxu0 0.0
        %324 = vmatprep.subr.mxu0 0.0
        %325 = vmatpush2.msra.mxu0 0.0
        %326 = vmatprep.subr.mxu0 0.0
        %327 = vmatpush2.msra.mxu0 0.0
        %328 = vmatprep.subr.mxu0 0.0
        %329 = vmatpush2.msra.mxu0 0.0
        %330 = vmatprep.subr.mxu0 0.0
        %331 = vmatpush2.msra.mxu0 0.0
        %332 = vmatprep.subr.mxu0 0.0
        %333 = vmatpush2.msra.mxu0 0.0
        %334 = vmatprep.subr.mxu0 0.0
        %335 = vmatpush2.msra.mxu0 0.0
        %336 = vmatprep.subr.mxu0 0.0
        %337 = vmatpush2.msra.mxu0 0.0
        %338 = vmatprep.subr.mxu0 0.0
        %339 = vmatpush2.msra.mxu0 0.0
        %340 = vmatprep.subr.mxu0 0.0
        %341 = vmatpush2.msra.mxu0 0.0
        %342 = vmatprep.mubr.f32.mxu0 0.0
        %343 = vmatmul.mubr.f32.gmra.mxu0 %v267
        %v344 = vpop.f32.mrf.mxu0
        %v345 = vadd.f32 0.0, %v344
        %v346 = vpop.f32.mrf.mxu0
        %347 = vmatprep.mubr.f32.mxu0 0.0
        %348 = vmatmul.mubr.f32.gmra.mxu0 %v270
        %v349 = vpop.f32.mrf.mxu0
        %v350 = vadd.f32 0.0, %v349
        %v351 = vpop.f32.mrf.mxu0
        %352 = vmatprep.mubr.f32.mxu0 0.0
        %353 = vmatmul.mubr.f32.gmra.mxu0 %v273
        %v354 = vpop.f32.mrf.mxu0
        %v355 = vadd.f32 0.0, %v354
        %v356 = vpop.f32.mrf.mxu0
        %357 = vmatprep.mubr.f32.mxu0 0.0
        %358 = vmatmul.mubr.f32.gmra.mxu0 %v276
        %v359 = vpop.f32.mrf.mxu0
        %v360 = vadd.f32 0.0, %v359
        %v361 = vpop.f32.mrf.mxu0
        %362 = vdwg.mxu0
        %v363 = vld [vmem:[%s219] sm:$0xf]
        %v364 = vld [vmem:[%s219 + $0x4] sm:$0xf]
        %v365 = vld [vmem:[%s219 + $0x8] sm:$0xf]
        %v366 = vld [vmem:[%s219 + $0xc] sm:$0xf]
        %v367 = vld [vmem:[%s219 + $0x10] sm:$0xf]
        %v368 = vld [vmem:[%s219 + $0x14] sm:$0xf]
        %v369 = vld [vmem:[%s219 + $0x18] sm:$0xf]
        %v370 = vld [vmem:[%s219 + $0x1c] sm:$0xf]
        %v371 = vld [vmem:[%s219 + $0x20] sm:$0xf]
        %v372 = vld [vmem:[%s219 + $0x24] sm:$0xf]
        %v373 = vld [vmem:[%s219 + $0x28] sm:$0xf]
        %v374 = vld [vmem:[%s219 + $0x2c] sm:$0xf]
        %v375 = vld [vmem:[%s219 + $0x30] sm:$0xf]
        %v376 = vld [vmem:[%s219 + $0x34] sm:$0xf]
        %v377 = vld [vmem:[%s219 + $0x38] sm:$0xf]
        %v378 = vld [vmem:[%s219 + $0x3c] sm:$0xf]
        %v379 = vld [vmem:[%s219 + $0x40] sm:$0xf]
        %v380 = vld [vmem:[%s219 + $0x44] sm:$0xf]
        %v381 = vld [vmem:[%s219 + $0x48] sm:$0xf]
        %v382 = vld [vmem:[%s219 + $0x4c] sm:$0xf]
        %v383 = vld [vmem:[%s219 + $0x50] sm:$0xf]
        %v384 = vld [vmem:[%s219 + $0x54] sm:$0xf]
        %v385 = vld [vmem:[%s219 + $0x58] sm:$0xf]
        %v386 = vld [vmem:[%s219 + $0x5c] sm:$0xf]
        %v387 = vld [vmem:[%s219 + $0x60] sm:$0xf]
        %v388 = vld [vmem:[%s219 + $0x64] sm:$0xf]
        %v389 = vld [vmem:[%s219 + $0x68] sm:$0xf]
        %v390 = vld [vmem:[%s219 + $0x6c] sm:$0xf]
        %v391 = vld [vmem:[%s219 + $0x70] sm:$0xf]
        %v392 = vld [vmem:[%s219 + $0x74] sm:$0xf]
        %v393 = vld [vmem:[%s219 + $0x78] sm:$0xf]
        %v394 = vld [vmem:[%s219 + $0x7c] sm:$0xf]
        %v395 = vunpack.c.l.bf16 %v363
        %v396 = vunpack.c.l.bf16 %v364
        %v397 = vunpack.c.l.bf16 %v365
        %v398 = vunpack.c.l.bf16 %v366
        %v399 = vunpack.c.l.bf16 %v367
        %v400 = vunpack.c.l.bf16 %v368
        %v401 = vunpack.c.l.bf16 %v369
        %v402 = vunpack.c.l.bf16 %v370
        %v403 = vunpack.c.l.bf16 %v371
        %v404 = vunpack.c.l.bf16 %v372
        %v405 = vunpack.c.l.bf16 %v373
        %v406 = vunpack.c.l.bf16 %v374
        %v407 = vunpack.c.l.bf16 %v375
        %v408 = vunpack.c.l.bf16 %v376
        %v409 = vunpack.c.l.bf16 %v377
        %v410 = vunpack.c.l.bf16 %v378
        %v411 = vunpack.c.l.bf16 %v379
        %v412 = vunpack.c.l.bf16 %v380
        %v413 = vunpack.c.l.bf16 %v381
        %v414 = vunpack.c.l.bf16 %v382
        %v415 = vunpack.c.l.bf16 %v383
        %v416 = vunpack.c.l.bf16 %v384
        %v417 = vunpack.c.l.bf16 %v385
        %v418 = vunpack.c.l.bf16 %v386
        %v419 = vunpack.c.l.bf16 %v387
        %v420 = vunpack.c.l.bf16 %v388
        %v421 = vunpack.c.l.bf16 %v389
        %v422 = vunpack.c.l.bf16 %v390
        %v423 = vunpack.c.l.bf16 %v391
        %v424 = vunpack.c.l.bf16 %v392
        %v425 = vunpack.c.l.bf16 %v393
        %v426 = vunpack.c.l.bf16 %v394
        %427 = vmatprep.subr.mxu0 0.0
        %428 = vmatpush1.msra.mxu0 %v426
        %429 = vmatprep.subr.mxu0 0.0
        %430 = vmatpush1.msra.mxu0 %v425
        %431 = vmatprep.subr.mxu0 0.0
        %432 = vmatpush1.msra.mxu0 %v424
        %433 = vmatprep.subr.mxu0 0.0
        %434 = vmatpush1.msra.mxu0 %v423
        %435 = vmatprep.subr.mxu0 0.0
        %436 = vmatpush1.msra.mxu0 %v422
        %437 = vmatprep.subr.mxu0 0.0
        %438 = vmatpush1.msra.mxu0 %v421
        %439 = vmatprep.subr.mxu0 0.0
        %440 = vmatpush1.msra.mxu0 %v420
        %441 = vmatprep.subr.mxu0 0.0
        %442 = vmatpush1.msra.mxu0 %v419
        %443 = vmatprep.subr.mxu0 0.0
        %444 = vmatpush1.msra.mxu0 %v418
        %445 = vmatprep.subr.mxu0 0.0
        %446 = vmatpush1.msra.mxu0 %v417
        %447 = vmatprep.subr.mxu0 0.0
        %448 = vmatpush1.msra.mxu0 %v416
        %449 = vmatprep.subr.mxu0 0.0
        %450 = vmatpush1.msra.mxu0 %v415
        %451 = vmatprep.subr.mxu0 0.0
        %452 = vmatpush1.msra.mxu0 %v414
        %453 = vmatprep.subr.mxu0 0.0
        %454 = vmatpush1.msra.mxu0 %v413
        %455 = vmatprep.subr.mxu0 0.0
        %456 = vmatpush1.msra.mxu0 %v412
        %457 = vmatprep.subr.mxu0 0.0
        %458 = vmatpush1.msra.mxu0 %v411
        %459 = vmatprep.subr.mxu0 0.0
        %460 = vmatpush2.msra.mxu0 0.0
        %461 = vmatprep.subr.mxu0 0.0
        %462 = vmatpush2.msra.mxu0 0.0
        %463 = vmatprep.subr.mxu0 0.0
        %464 = vmatpush2.msra.mxu0 0.0
        %465 = vmatprep.subr.mxu0 0.0
        %466 = vmatpush2.msra.mxu0 0.0
        %467 = vmatprep.subr.mxu0 0.0
        %468 = vmatpush2.msra.mxu0 0.0
        %469 = vmatprep.subr.mxu0 0.0
        %470 = vmatpush2.msra.mxu0 0.0
        %471 = vmatprep.subr.mxu0 0.0
        %472 = vmatpush2.msra.mxu0 0.0
        %473 = vmatprep.subr.mxu0 0.0
        %474 = vmatpush2.msra.mxu0 0.0
        %475 = vmatprep.subr.mxu0 0.0
        %476 = vmatpush2.msra.mxu0 0.0
        %477 = vmatprep.subr.mxu0 0.0
        %478 = vmatpush2.msra.mxu0 0.0
        %479 = vmatprep.subr.mxu0 0.0
        %480 = vmatpush2.msra.mxu0 0.0
        %481 = vmatprep.subr.mxu0 0.0
        %482 = vmatpush2.msra.mxu0 0.0
        %483 = vmatprep.subr.mxu0 0.0
        %484 = vmatpush2.msra.mxu0 0.0
        %485 = vmatprep.subr.mxu0 0.0
        %486 = vmatpush2.msra.mxu0 0.0
        %487 = vmatprep.subr.mxu0 0.0
        %488 = vmatpush2.msra.mxu0 0.0
        %489 = vmatprep.subr.mxu0 0.0
        %490 = vmatpush2.msra.mxu0 0.0
        %491 = vmatprep.mubr.f32.mxu0 0.0
        %492 = vmatmul.mubr.f32.gmra.mxu0 %v257
        %v493 = vpop.f32.mrf.mxu0
        %v494 = vadd.f32 0.0, %v493
        %v495 = vpop.f32.mrf.mxu0
        %496 = vmatprep.mubr.f32.mxu0 0.0
        %497 = vmatmul.mubr.f32.gmra.mxu0 %v258
        %v498 = vpop.f32.mrf.mxu0
        %v499 = vadd.f32 0.0, %v498
        %v500 = vpop.f32.mrf.mxu0
        %501 = vmatprep.mubr.f32.mxu0 0.0
        %502 = vmatmul.mubr.f32.gmra.mxu0 %v259
        %v503 = vpop.f32.mrf.mxu0
        %v504 = vadd.f32 0.0, %v503
        %v505 = vpop.f32.mrf.mxu0
        %506 = vmatprep.mubr.f32.mxu0 0.0
        %507 = vmatmul.mubr.f32.gmra.mxu0 %v260
        %v508 = vpop.f32.mrf.mxu0
        %v509 = vadd.f32 0.0, %v508
        %v510 = vpop.f32.mrf.mxu0
        %511 = vdwg.mxu0
        %512 = vmatprep.subr.mxu0 0.0
        %513 = vmatpush1.msra.mxu0 %v410
        %514 = vmatprep.subr.mxu0 0.0
        %515 = vmatpush1.msra.mxu0 %v409
        %516 = vmatprep.subr.mxu0 0.0
        %517 = vmatpush1.msra.mxu0 %v408
        %518 = vmatprep.subr.mxu0 0.0
        %519 = vmatpush1.msra.mxu0 %v407
        %520 = vmatprep.subr.mxu0 0.0
        %521 = vmatpush1.msra.mxu0 %v406
        %522 = vmatprep.subr.mxu0 0.0
        %523 = vmatpush1.msra.mxu0 %v405
        %524 = vmatprep.subr.mxu0 0.0
        %525 = vmatpush1.msra.mxu0 %v404
        %526 = vmatprep.subr.mxu0 0.0
        %527 = vmatpush1.msra.mxu0 %v403
        %528 = vmatprep.subr.mxu0 0.0
        %529 = vmatpush1.msra.mxu0 %v402
        %530 = vmatprep.subr.mxu0 0.0
        %531 = vmatpush1.msra.mxu0 %v401
        %532 = vmatprep.subr.mxu0 0.0
        %533 = vmatpush1.msra.mxu0 %v400
        %534 = vmatprep.subr.mxu0 0.0
        %535 = vmatpush1.msra.mxu0 %v399
        %536 = vmatprep.subr.mxu0 0.0
        %537 = vmatpush1.msra.mxu0 %v398
        %538 = vmatprep.subr.mxu0 0.0
        %539 = vmatpush1.msra.mxu0 %v397
        %540 = vmatprep.subr.mxu0 0.0
        %541 = vmatpush1.msra.mxu0 %v396
        %542 = vmatprep.subr.mxu0 0.0
        %543 = vmatpush1.msra.mxu0 %v395
        %544 = vmatprep.subr.mxu0 0.0
        %545 = vmatpush2.msra.mxu0 0.0
        %546 = vmatprep.subr.mxu0 0.0
        %547 = vmatpush2.msra.mxu0 0.0
        %548 = vmatprep.subr.mxu0 0.0
        %549 = vmatpush2.msra.mxu0 0.0
        %550 = vmatprep.subr.mxu0 0.0
        %551 = vmatpush2.msra.mxu0 0.0
        %552 = vmatprep.subr.mxu0 0.0
        %553 = vmatpush2.msra.mxu0 0.0
        %554 = vmatprep.subr.mxu0 0.0
        %555 = vmatpush2.msra.mxu0 0.0
        %556 = vmatprep.subr.mxu0 0.0
        %557 = vmatpush2.msra.mxu0 0.0
        %558 = vmatprep.subr.mxu0 0.0
        %559 = vmatpush2.msra.mxu0 0.0
        %560 = vmatprep.subr.mxu0 0.0
        %561 = vmatpush2.msra.mxu0 0.0
        %562 = vmatprep.subr.mxu0 0.0
        %563 = vmatpush2.msra.mxu0 0.0
        %564 = vmatprep.subr.mxu0 0.0
        %565 = vmatpush2.msra.mxu0 0.0
        %566 = vmatprep.subr.mxu0 0.0
        %567 = vmatpush2.msra.mxu0 0.0
        %568 = vmatprep.subr.mxu0 0.0
        %569 = vmatpush2.msra.mxu0 0.0
        %570 = vmatprep.subr.mxu0 0.0
        %571 = vmatpush2.msra.mxu0 0.0
        %572 = vmatprep.subr.mxu0 0.0
        %573 = vmatpush2.msra.mxu0 0.0
        %574 = vmatprep.subr.mxu0 0.0
        %575 = vmatpush2.msra.mxu0 0.0
        %576 = vmatprep.mubr.f32.mxu0 0.0
        %577 = vmatmul.mubr.f32.gmra.mxu0 %v345
        %v578 = vpop.f32.mrf.mxu0
        %v579 = vadd.f32 %v494, %v578
        %v580 = vpop.f32.mrf.mxu0
        %581 = vmatprep.mubr.f32.mxu0 0.0
        %582 = vmatmul.mubr.f32.gmra.mxu0 %v350
        %v583 = vpop.f32.mrf.mxu0
        %v584 = vadd.f32 %v499, %v583
        %v585 = vpop.f32.mrf.mxu0
        %586 = vmatprep.mubr.f32.mxu0 0.0
        %587 = vmatmul.mubr.f32.gmra.mxu0 %v355
        %v588 = vpop.f32.mrf.mxu0
        %v589 = vadd.f32 %v504, %v588
        %v590 = vpop.f32.mrf.mxu0
        %591 = vmatprep.mubr.f32.mxu0 0.0
        %592 = vmatmul.mubr.f32.gmra.mxu0 %v360
        %v593 = vpop.f32.mrf.mxu0
        %v594 = vadd.f32 %v509, %v593
        %v595 = vpop.f32.mrf.mxu0
        %596 = vdwg.mxu0
        %v597 = vld [vmem:[%s244] sm:$0x1]
        %v599 = vlaneseq
        %v600 = vshrl.u32 %v599, 7
        %v601 = vsub.s32 0, %v600
        %v602 = vrot.slane %v597, %v601
        %v604 = vadd.f32 %v579, %v602
        %v605 = vadd.f32 %v584, %v602
        %v606 = vadd.f32 %v589, %v602
        %v607 = vadd.f32 %v594, %v602
        %v608 = vmax.f32 %v604, 0.0
        %v609 = vmax.f32 %v605, 0.0
        %v610 = vmax.f32 %v606, 0.0
        %v611 = vmax.f32 %v607, 0.0
        %612 = vst [vmem:[#allocation2] sm:$0xff] %v608
        %613 = vst [vmem:[#allocation2 + $0x8] sm:$0xff] %v609
        %614 = vst [vmem:[#allocation2 + $0x10] sm:$0xff] %v610
        %615 = vst [vmem:[#allocation2 + $0x18] sm:$0xff] %v611
        %p616 = scmp.eq.s32.totalorder %s18, 4
        // Predicated region
        $region53: #{tpu_custom_call.1} parent=35 // pred_check
          %p617 = pneg %p616
        $region54: #{tpu_custom_call.1} parent=35 // pred_check_branch
          %619 = sbr.rel (%p617) target = $region56
        $region55: #{tpu_custom_call.1} parent=35 // pred_region
          %620 = vst [vmem:[#allocation9] sm:$0xff] %v604
          %621 = vst [vmem:[#allocation9 + $0x8] sm:$0xff] %v605
          %622 = vst [vmem:[#allocation9 + $0x10] sm:$0xff] %v606
          %623 = vst [vmem:[#allocation9 + $0x18] sm:$0xff] %v607
        $region56: #{tpu_custom_call.1} parent=35 // pred_fallthru
          _
        // Predicated region
        $region57: #{tpu_custom_call.1} parent=35 // pred_check
          %p624 = pneg %p125
        $region58: #{tpu_custom_call.1} parent=35 // pred_check_branch
          %626 = sbr.rel (%p624) target = $region60
        $region59: #{tpu_custom_call.1} parent=35 // pred_region
          %s628 = ssub.s32 512, 512
          %629 = vsyncadd [#allocation5], %s628
          %s630 = sshll.u32 [#allocation9], 4
          %s631 = int_to_ptr.vmem [resolvable:$true] %s630
          %636 = dma.vmem_to_hbm [thread:$0]  %s631, 512, %s4, [#allocation5], 128, 128, 8
        $region60: #{tpu_custom_call.1} parent=35 // pred_fallthru
          _
        // Predicated region
        $region61: #{tpu_custom_call.1} parent=35 // pred_check
          %p637 = pneg %p125
        $region62: #{tpu_custom_call.1} parent=35 // pred_check_branch
          %639 = sbr.rel (%p637) target = $region64
        $region63: #{tpu_custom_call.1} parent=35 // pred_region
          %640 = dma.done [#allocation5], 512
        $region64: #{tpu_custom_call.1} parent=35 // pred_fallthru
          _
      $region36: #{tpu_custom_call.1} parent=5 // pred_fallthru
        _
      %p641 = scmp.le.s32.totalorder 2, %s13
      // Predicated region
      $region65: #{tpu_custom_call.1} parent=5 // pred_check
        %p642 = pneg %p641
      $region66: #{tpu_custom_call.1} parent=5 // pred_check_branch
        %644 = sbr.rel (%p642) target = $region68
      $region67: #{tpu_custom_call.1} parent=5 // pred_region
        %s645 = ssub.s32 %s13, 2
      $region68: #{tpu_custom_call.1} parent=5 // pred_fallthru
        _
    $region6: #{tpu_custom_call.1} parent=1 // loop_footer
      %s17 = sadd.s32 1, %s13
    $region7: #{tpu_custom_call.1} parent=1 // loop_footer_branch
      %12 = sbr.rel target = $region3
    $region8: #{tpu_custom_call.1} parent=1 // loop_exit
      _
    %646 = vsyncpa [#allocation4], 1
    %s647 = scalar_lea.sflag [#allocation4], 1
    %648 = vsyncpa %s647, 1
    %649 = vsyncpa [#allocation7], 1
    %650 = vsyncpa [#allocation5], 1
    %s651 = scalar_lea.sflag [#allocation5], 1
    %652 = vsyncpa %s651, 1

</llo_original>
